<compile_context>
chip_gen: v5e
topology: v5e:2x2
jax: 0.10.0
libtpu: 0.0.40
codegen_flags: <defaults>
</compile_context>

<pallas_src>
import jax
import jax.numpy as jnp
from jax.experimental import pallas as pl
from jax.experimental.pallas import tpu as pltpu


# --------------------------------- kernels -----------------------------------
def _cfg_kernel_nomask(bias_ref, wxz_ref, wxcc_ref, wxcu_ref,
                       z_ref, ccond_ref, cuncond_ref, out_ref):
    """bias f32[Cout,1]; weights bf16; z/ccond/cuncond bf16[*, TILE]."""
    den = (jnp.dot(wxz_ref[...], z_ref[...],
                   preferred_element_type=jnp.float32)
           + jnp.dot(wxcc_ref[...], ccond_ref[...],
                     preferred_element_type=jnp.float32)
           + jnp.dot(wxcu_ref[...], cuncond_ref[...],
                     preferred_element_type=jnp.float32)
           + bias_ref[...])                                   # lane broadcast
    out_ref[...] = den.astype(out_ref.dtype)


def _cfg_kernel_masked(bias_ref, wxz_ref, wxcc_ref, wxcu_ref,
                       z_ref, ccond_ref, cuncond_ref, mask_ref, x0_ref,
                       out_ref):
    """Adds the x0/mask blend.  mask bf16[Mc,TILE] (Mc in {1,Cout}),
    x0 bf16[Cout,TILE]; blend arithmetic stays f32."""
    den = (jnp.dot(wxz_ref[...], z_ref[...],
                   preferred_element_type=jnp.float32)
           + jnp.dot(wxcc_ref[...], ccond_ref[...],
                     preferred_element_type=jnp.float32)
           + jnp.dot(wxcu_ref[...], cuncond_ref[...],
                     preferred_element_type=jnp.float32)
           + bias_ref[...])
    m = mask_ref[...].astype(jnp.float32)
    den = x0_ref[...].astype(jnp.float32) * (1.0 - m) + m * den
    out_ref[...] = den.astype(out_ref.dtype)


# --------------------------------- wrapper ------------------------------------
def _pick_tile(hw, max_tile, min_steps=4):
    """Largest 128-multiple divisor of hw that is <= max_tile and (when
    possible) leaves >= min_steps grid steps for pipelining / megacore.
    Falls back to hw (single tile) if hw has no 128-multiple divisor."""
    cap = min(max_tile, hw)
    divisors = [t for t in range(128, cap + 1, 128) if hw % t == 0]
    if not divisors:
        return hw
    target = max(128, hw // min_steps)
    good = [t for t in divisors if t <= target]
    return max(good) if good else min(divisors)


def cfg_pix2pix_denoiser(z, sigma, cond, uncond,
                         text_cfg_scale, image_cfg_scale,
                         mask, x0, wx, wctx, *,
                         max_tile=16384, out_dtype=jnp.float32,
                         vmem_limit_bytes=None):
    """JAX wrapper reproducing CFGPix2PixDenoiser.forward semantics.

    z:      f32[1, C, H, W]          sigma: f32[1]
    cond:   {'c_crossattn': [f32[1, T, D]], 'c_concat': [f32[1, Cc, H, W]]}
    uncond: same structure as cond
    mask:   f32[1, 1|C, H, W] or None; x0: f32[1, C, H, W] (required if mask)
    wx:     f32[Cout, C + Cc]        wctx: f32[Cout, D]   (synthetic inner model)
    """
    assert z.shape[0] == 1, "module repeats a batch-1 latent 3x"
    _, C, H, W = z.shape
    HW = H * W
    Cout, Cin = wx.shape
    Cc = Cin - C

    t = jnp.float32(text_cfg_scale)
    i = jnp.float32(image_cfg_scale)

    # Streamed image tensors go to the kernel in bf16 (halves dominant HBM bytes).
    z_f = z.reshape(C, HW).astype(jnp.bfloat16)
    ccond = cond['c_concat'][0].reshape(Cc, HW).astype(jnp.bfloat16)
    cuncond = uncond['c_concat'][0].reshape(Cc, HW).astype(jnp.bfloat16)

    # CFG fold: image_cfg_scale is absorbed into the c_concat weights (exact
    # for the linear surrogate), so the kernel does plain bf16 dots on the
    # streamed refs with no in-kernel mix temporary.
    wx_f = wx.astype(jnp.float32)
    wxz = wx_f[:, :C].astype(jnp.bfloat16)
    wxc_c = (i * wx_f[:, C:]).astype(jnp.bfloat16)
    wxc_u = ((1.0 - i) * wx_f[:, C:]).astype(jnp.bfloat16)

    # Context-bias path of the synthetic inner model, hoisted out of the
    # per-tile body and folded with the CFG weights + sigma gate into one
    # [Cout, 1] column (CFG branches 1 and 2 share the uncond crossattn).
    sig = sigma.reshape(()).astype(jnp.float32)
    gate = 1.0 / (sig * sig + 1.0)
    c_mean = jnp.mean(cond['c_crossattn'][0][0].astype(jnp.float32),
                      axis=0, keepdims=True)                       # [1, D]
    u_mean = jnp.mean(uncond['c_crossattn'][0][0].astype(jnp.float32),
                      axis=0, keepdims=True)
    wctx_f = wctx.astype(jnp.float32)
    b_c = jnp.sum(wctx_f * c_mean, axis=1, keepdims=True)          # [Cout, 1]
    b_u = jnp.sum(wctx_f * u_mean, axis=1, keepdims=True)
    bias = gate * (t * b_c + (1.0 - t) * b_u)                      # [Cout, 1]

    TILE = _pick_tile(HW, max_tile)
    assert HW % TILE == 0, "grid would drop a spatial remainder"
    grid = (HW // TILE,)

    def const_spec(shape):
        return pl.BlockSpec(shape, lambda ii: (0, 0))

    def tiled_spec(ch):
        return pl.BlockSpec((ch, TILE), lambda ii: (0, ii))

    in_specs = [const_spec((Cout, 1)),      # folded context bias (f32)
                const_spec((Cout, C)),      # Wz
                const_spec((Cout, Cc)),     # i * Wc
                const_spec((Cout, Cc)),     # (1 - i) * Wc
                tiled_spec(C),              # z
                tiled_spec(Cc),             # cond c_concat
                tiled_spec(Cc)]             # uncond c_concat
    args = [bias, wxz, wxc_c, wxc_u, z_f, ccond, cuncond]

    if mask is not None:
        assert x0 is not None
        Mc = mask.shape[1]                  # 1 (broadcast in-kernel) or Cout
        assert Mc == 1 or Mc == Cout, "per-channel mask must match Cout"
        # Binary 0/1 masks are exact in bf16; blend arithmetic stays f32.
        mask_f = jnp.asarray(mask, jnp.float32).reshape(Mc, HW).astype(jnp.bfloat16)
        x0_f = x0.reshape(Cout, HW).astype(jnp.bfloat16)
        in_specs += [tiled_spec(Mc), tiled_spec(Cout)]
        args += [mask_f, x0_f]
        kernel = _cfg_kernel_masked
    else:
        # Specialized kernel: no dummy mask/x0 streams, no blend VPU passes.
        kernel = _cfg_kernel_nomask

    cp_kwargs = dict(dimension_semantics=("parallel",))  # v7x: shard HW on 2 TCs
    if vmem_limit_bytes is not None:
        cp_kwargs["vmem_limit_bytes"] = vmem_limit_bytes

    out = pl.pallas_call(
        kernel,
        out_shape=jax.ShapeDtypeStruct((Cout, HW), out_dtype),
        grid=grid,
        in_specs=in_specs,
        out_specs=pl.BlockSpec((Cout, TILE), lambda ii: (0, ii)),
        compiler_params=pltpu.CompilerParams(**cp_kwargs),
    )(*args)

    return out.reshape(1, Cout, H, W)


# ----------------------------- pure-JAX reference ----------------------------
def _inner_model_ref(x, sigma, cond, wx, wctx):
    cc = cond['c_concat'][0]
    ca = cond['c_crossattn'][0]
    N, _, H, W = x.shape
    feat = jnp.concatenate([x, cc], axis=1).reshape(N, -1, H * W)
    main = jnp.einsum('oc,nch->noh', wx, feat)
    bias = jnp.einsum('od,nd->no', wctx, ca.mean(axis=1))
    gate = 1.0 / (sigma ** 2 + 1.0)
    out = main + (bias * gate[:, None])[:, :, None]
    return out.reshape(N, -1, H, W)


def _forward_ref(z, sigma, cond, uncond, text_cfg_scale, image_cfg_scale,
                 mask, x0, wx, wctx):
    cfg_z = jnp.repeat(z, 3, axis=0)
    cfg_sigma = jnp.repeat(sigma, 3, axis=0)
    cfg_cond = {
        'c_crossattn': [jnp.concatenate([cond['c_crossattn'][0],
                                         uncond['c_crossattn'][0],
                                         uncond['c_crossattn'][0]])],
        'c_concat': [jnp.concatenate([cond['c_concat'][0],
                                      cond['c_concat'][0],
                                      uncond['c_concat'][0]])],
    }
    out = _inner_model_ref(cfg_z, cfg_sigma, cfg_cond, wx, wctx)
    out_cond, out_img_cond, out_uncond = jnp.split(out, 3, axis=0)
    denoised = (out_uncond
                + text_cfg_scale * (out_cond - out_img_cond)
                + image_cfg_scale * (out_img_cond - out_uncond))
    if mask is not None:
        denoised = x0 * (1.0 - mask) + mask * denoised
    return denoised


# ----------------------------------- demo -------------------------------------
def _make_inputs(key, C, Cc, T, D, H, W, with_mask):
    kz, kcc, kucc, kca, kuca, km, kx0, kwx, kwctx = jax.random.split(key, 9)
    z = jax.random.normal(kz, (1, C, H, W), jnp.float32)
    sigma = jnp.array([0.7], jnp.float32)
    cond = {'c_crossattn': [jax.random.normal(kca, (1, T, D), jnp.float32)],
            'c_concat':    [jax.random.normal(kcc, (1, Cc, H, W), jnp.float32)]}
    uncond = {'c_crossattn': [jax.random.normal(kuca, (1, T, D), jnp.float32)],
              'c_concat':    [jax.random.normal(kucc, (1, Cc, H, W), jnp.float32)]}
    if with_mask:
        mask = (jax.random.uniform(km, (1, 1, H, W)) > 0.5).astype(jnp.float32)
        x0 = jax.random.normal(kx0, (1, C, H, W), jnp.float32)
    else:
        mask, x0 = None, None
    wx = jax.random.normal(kwx, (C, C + Cc), jnp.float32) * 0.2
    wctx = jax.random.normal(kwctx, (C, D), jnp.float32) * 0.1
    return z, sigma, cond, uncond, mask, x0, wx, wctx


if __name__ == "__main__":
    C, Cc, T, D = 4, 4, 8, 32
    text_cfg_scale, image_cfg_scale = 7.5, 1.5

    # Test 1: masked blend path, H=W=16 (HW=256 -> TILE=128, 2 grid steps).
    (z, sigma, cond, uncond, mask, x0,
     wx, wctx) = _make_inputs(jax.random.PRNGKey(0), C, Cc, T, D, 16, 16, True)
    out = cfg_pix2pix_denoiser(z, sigma, cond, uncond,
                               text_cfg_scale, image_cfg_scale,
                               mask, x0, wx, wctx)
    out = jax.block_until_ready(out)
    ref = _forward_ref(z, sigma, cond, uncond, text_cfg_scale, image_cfg_scale,
                       mask, x0, wx, wctx)
    assert out.shape == (1, C, 16, 16)
    assert jnp.allclose(out, ref, rtol=5e-2, atol=5e-2), "masked path mismatch"

    # Test 2: mask=None specialization, H=W=32 (HW=1024 -> TILE=256, 4 steps).
    (z, sigma, cond, uncond, _, _,
     wx, wctx) = _make_inputs(jax.random.PRNGKey(1), C, Cc, T, D, 32, 32, False)
    out = cfg_pix2pix_denoiser(z, sigma, cond, uncond,
                               text_cfg_scale, image_cfg_scale,
                               None, None, wx, wctx)
    out = jax.block_until_ready(out)
    ref = _forward_ref(z, sigma, cond, uncond, text_cfg_scale, image_cfg_scale,
                       None, None, wx, wctx)
    assert out.shape == (1, C, 32, 32)
    assert jnp.allclose(out, ref, rtol=5e-2, atol=5e-2), "no-mask path mismatch"

    print("KERNEL_OK")
</pallas_src>

<mosaic_0001>
module attributes {stable_mosaic.version = 11 : i64} {
  func.func @_cfg_kernel_masked(%arg0: i32, %arg1: memref<4x1xf32, #tpu.memory_space<vmem>>, %arg2: memref<4x4xbf16, #tpu.memory_space<vmem>>, %arg3: memref<4x4xbf16, #tpu.memory_space<vmem>>, %arg4: memref<4x4xbf16, #tpu.memory_space<vmem>>, %arg5: memref<4x128xbf16, #tpu.memory_space<vmem>>, %arg6: memref<4x128xbf16, #tpu.memory_space<vmem>>, %arg7: memref<4x128xbf16, #tpu.memory_space<vmem>>, %arg8: memref<1x128xbf16, #tpu.memory_space<vmem>>, %arg9: memref<4x128xbf16, #tpu.memory_space<vmem>>, %arg10: memref<4x128xf32, #tpu.memory_space<vmem>>) attributes {dimension_semantics = [#tpu.dimension_semantics<parallel>], iteration_bounds = array<i64: 2>, scalar_prefetch = 0 : i64, scratch_operands = 0 : i64, tpu.core_type = #tpu.core_type<tc>, window_params = [{pipeline_mode = #tpu.pipeline_mode<synchronous>, transform_indices = @transform_0, window_bounds = array<i64: 4, 1>}, {pipeline_mode = #tpu.pipeline_mode<synchronous>, transform_indices = @transform_1, window_bounds = array<i64: 4, 4>}, {pipeline_mode = #tpu.pipeline_mode<synchronous>, transform_indices = @transform_2, window_bounds = array<i64: 4, 4>}, {pipeline_mode = #tpu.pipeline_mode<synchronous>, transform_indices = @transform_3, window_bounds = array<i64: 4, 4>}, {transform_indices = @transform_4, window_bounds = array<i64: 4, 128>}, {transform_indices = @transform_5, window_bounds = array<i64: 4, 128>}, {transform_indices = @transform_6, window_bounds = array<i64: 4, 128>}, {transform_indices = @transform_7, window_bounds = array<i64: 1, 128>}, {transform_indices = @transform_8, window_bounds = array<i64: 4, 128>}, {transform_indices = @transform_9, window_bounds = array<i64: 4, 128>}]} {
    %c0 = arith.constant 0 : index
    %c0_0 = arith.constant 0 : index
    %0 = vector.load %arg2[%c0, %c0_0] : memref<4x4xbf16, #tpu.memory_space<vmem>>, vector<4x4xbf16>
    %c0_1 = arith.constant 0 : index
    %c0_2 = arith.constant 0 : index
    %1 = vector.load %arg5[%c0_1, %c0_2] : memref<4x128xbf16, #tpu.memory_space<vmem>>, vector<4x128xbf16>
    %cst = arith.constant dense<0.000000e+00> : vector<4x128xf32>
    %2 = tpu.matmul %0, %1, %cst {dimension_numbers = #tpu.dot_dimension_numbers<[1], [0], [0], [1], [0, 0, 1, 1], [], []>} : vector<4x4xbf16>, vector<4x128xbf16>, vector<4x128xf32> -> vector<4x128xf32>
    %c0_3 = arith.constant 0 : index
    %c0_4 = arith.constant 0 : index
    %3 = vector.load %arg3[%c0_3, %c0_4] : memref<4x4xbf16, #tpu.memory_space<vmem>>, vector<4x4xbf16>
    %c0_5 = arith.constant 0 : index
    %c0_6 = arith.constant 0 : index
    %4 = vector.load %arg6[%c0_5, %c0_6] : memref<4x128xbf16, #tpu.memory_space<vmem>>, vector<4x128xbf16>
    %cst_7 = arith.constant dense<0.000000e+00> : vector<4x128xf32>
    %5 = tpu.matmul %3, %4, %cst_7 {dimension_numbers = #tpu.dot_dimension_numbers<[1], [0], [0], [1], [0, 0, 1, 1], [], []>} : vector<4x4xbf16>, vector<4x128xbf16>, vector<4x128xf32> -> vector<4x128xf32>
    %6 = arith.addf %2, %5 : vector<4x128xf32>
    %c0_8 = arith.constant 0 : index
    %c0_9 = arith.constant 0 : index
    %7 = vector.load %arg4[%c0_8, %c0_9] : memref<4x4xbf16, #tpu.memory_space<vmem>>, vector<4x4xbf16>
    %c0_10 = arith.constant 0 : index
    %c0_11 = arith.constant 0 : index
    %8 = vector.load %arg7[%c0_10, %c0_11] : memref<4x128xbf16, #tpu.memory_space<vmem>>, vector<4x128xbf16>
    %cst_12 = arith.constant dense<0.000000e+00> : vector<4x128xf32>
    %9 = tpu.matmul %7, %8, %cst_12 {dimension_numbers = #tpu.dot_dimension_numbers<[1], [0], [0], [1], [0, 0, 1, 1], [], []>} : vector<4x4xbf16>, vector<4x128xbf16>, vector<4x128xf32> -> vector<4x128xf32>
    %10 = arith.addf %6, %9 : vector<4x128xf32>
    %c0_13 = arith.constant 0 : index
    %c0_14 = arith.constant 0 : index
    %11 = vector.load %arg1[%c0_13, %c0_14] : memref<4x1xf32, #tpu.memory_space<vmem>>, vector<4x1xf32>
    %12 = vector.broadcast %11 : vector<4x1xf32> to vector<4x128xf32>
    %13 = arith.addf %10, %12 : vector<4x128xf32>
    %c0_15 = arith.constant 0 : index
    %c0_16 = arith.constant 0 : index
    %14 = vector.load %arg8[%c0_15, %c0_16] : memref<1x128xbf16, #tpu.memory_space<vmem>>, vector<1x128xbf16>
    %15 = arith.extf %14 : vector<1x128xbf16> to vector<1x128xf32>
    %c0_17 = arith.constant 0 : index
    %c0_18 = arith.constant 0 : index
    %16 = vector.load %arg9[%c0_17, %c0_18] : memref<4x128xbf16, #tpu.memory_space<vmem>>, vector<4x128xbf16>
    %17 = arith.extf %16 : vector<4x128xbf16> to vector<4x128xf32>
    %cst_19 = arith.constant 1.000000e+00 : f32
    %18 = vector.broadcast %cst_19 : f32 to vector<1x128xf32>
    %19 = arith.subf %18, %15 : vector<1x128xf32>
    %20 = vector.broadcast %19 : vector<1x128xf32> to vector<4x128xf32>
    %21 = arith.mulf %17, %20 : vector<4x128xf32>
    %22 = vector.broadcast %15 : vector<1x128xf32> to vector<4x128xf32>
    %23 = arith.mulf %22, %13 : vector<4x128xf32>
    %24 = arith.addf %21, %23 : vector<4x128xf32>
    %c0_20 = arith.constant 0 : index
    %c0_21 = arith.constant 0 : index
    %25 = vector.load %arg10[%c0_20, %c0_21] : memref<4x128xf32, #tpu.memory_space<vmem>>, vector<4x128xf32>
    tpu.vector_store %arg10[%c0_20, %c0_21], %24 {strides = array<i32>} : memref<4x128xf32, #tpu.memory_space<vmem>>, vector<4x128xf32>,
    return
  }
  func.func @transform_0(%arg0: i32) -> (i32, i32) {
    %c0_i32 = arith.constant 0 : i32
    %c0_i32_0 = arith.constant 0 : i32
    %c0_i32_1 = arith.constant 0 : i32
    return %c0_i32, %c0_i32_0 : i32, i32
  }
  func.func @transform_1(%arg0: i32) -> (i32, i32) {
    %c0_i32 = arith.constant 0 : i32
    %c0_i32_0 = arith.constant 0 : i32
    %c0_i32_1 = arith.constant 0 : i32
    return %c0_i32, %c0_i32_0 : i32, i32
  }
  func.func @transform_2(%arg0: i32) -> (i32, i32) {
    %c0_i32 = arith.constant 0 : i32
    %c0_i32_0 = arith.constant 0 : i32
    %c0_i32_1 = arith.constant 0 : i32
    return %c0_i32, %c0_i32_0 : i32, i32
  }
  func.func @transform_3(%arg0: i32) -> (i32, i32) {
    %c0_i32 = arith.constant 0 : i32
    %c0_i32_0 = arith.constant 0 : i32
    %c0_i32_1 = arith.constant 0 : i32
    return %c0_i32, %c0_i32_0 : i32, i32
  }
  func.func @transform_4(%arg0: i32) -> (i32, i32) {
    %c0_i32 = arith.constant 0 : i32
    %c0_i32_0 = arith.constant 0 : i32
    return %c0_i32, %arg0 : i32, i32
  }
  func.func @transform_5(%arg0: i32) -> (i32, i32) {
    %c0_i32 = arith.constant 0 : i32
    %c0_i32_0 = arith.constant 0 : i32
    return %c0_i32, %arg0 : i32, i32
  }
  func.func @transform_6(%arg0: i32) -> (i32, i32) {
    %c0_i32 = arith.constant 0 : i32
    %c0_i32_0 = arith.constant 0 : i32
    return %c0_i32, %arg0 : i32, i32
  }
  func.func @transform_7(%arg0: i32) -> (i32, i32) {
    %c0_i32 = arith.constant 0 : i32
    %c0_i32_0 = arith.constant 0 : i32
    return %c0_i32, %arg0 : i32, i32
  }
  func.func @transform_8(%arg0: i32) -> (i32, i32) {
    %c0_i32 = arith.constant 0 : i32
    %c0_i32_0 = arith.constant 0 : i32
    return %c0_i32, %arg0 : i32, i32
  }
  func.func @transform_9(%arg0: i32) -> (i32, i32) {
    %c0_i32 = arith.constant 0 : i32
    %c0_i32_0 = arith.constant 0 : i32
    return %c0_i32, %arg0 : i32, i32
  }
}

</mosaic_0001>

<llo_original>
// kernel: tpu_custom_call.1
$region0: #{tpu_custom_call.1}
  #allocation0 [shape = 'u32[]', space=smem, size = 0x4, offset = 0x4, fixed_abs, tag = 'smem constant byte address 0x4 - core index']
  #allocation1 [shape = 'u32[72,128]{1,0:T(1,128)}', space=vmem, size = 0x9000, scoped, tag = 'internal scratch']
  %s0 = inlined_call_operand.vmem [shape: f32[4,1], index: 0, kind: input, shape index: {}]
  %s1 = inlined_call_operand.hbm [shape: bf16[4,4], index: 1, kind: input, shape index: {}]
  %s2 = inlined_call_operand.hbm [shape: bf16[4,4], index: 2, kind: input, shape index: {}]
  %s3 = inlined_call_operand.hbm [shape: bf16[4,4], index: 3, kind: input, shape index: {}]
  %s4 = inlined_call_operand.vmem [shape: bf16[4,256], index: 4, kind: input, shape index: {}]
  %s5 = inlined_call_operand.vmem [shape: bf16[4,256], index: 5, kind: input, shape index: {}]
  %s6 = inlined_call_operand.hbm [shape: bf16[4,256], index: 6, kind: input, shape index: {}]
  %s7 = inlined_call_operand.hbm [shape: bf16[1,256], index: 7, kind: input, shape index: {}]
  %s8 = inlined_call_operand.vmem [shape: bf16[4,256], index: 8, kind: input, shape index: {}]
  %s9 = inlined_call_operand.hbm [shape: f32[4,256], index: 9, kind: output, shape index: {}]
  %s10 = sld [smem:[#allocation0]]
  $region89: #{tpu_custom_call.1} parent=0
    _
  %s12 = ssub.s32 1, %s10
  %s13 = scalar_select 0, %s12, %s10
  $region1: #{tpu_custom_call.1} parent=0
    #allocation2 [shape = 'u8[1024]{0}', space=vmem, size = 0x400, scoped, tag = 'input window, operand 1, single buffered']
    #allocation3 [shape = 's32[2]{0}', space=sflag, size = 0x8, scoped, tag = 'scoped memory for tpu_custom_call.1']
    #allocation4 [shape = 's32[2]{0}', space=sflag, size = 0x8, scoped, tag = 'scoped memory for tpu_custom_call.1']
    #allocation5 [shape = 'u8[1024]{0}', space=vmem, size = 0x400, scoped, tag = 'input window, operand 2, single buffered']
    #allocation6 [shape = 's32[1]{0}', space=sflag, size = 0x4, scoped, tag = 'scoped memory for tpu_custom_call.1']
    #allocation7 [shape = 'u8[1024]{0}', space=vmem, size = 0x400, scoped, tag = 'input window, operand 3, single buffered']
    #allocation8 [shape = 'u8[2048]{0}', space=vmem, size = 0x800, scoped, tag = 'input window, operand 6']
    #allocation9 [shape = 's32[2]{0}', space=sflag, size = 0x8, scoped, tag = 'scoped memory for tpu_custom_call.1']
    #allocation10 [shape = 'u8[1024]{0}', space=vmem, size = 0x400, scoped, tag = 'input window, operand 7']
    #allocation11 [shape = 'u8[4096]{0}', space=vmem, size = 0x1000, scoped, tag = 'output window, operand 0']
    %14 = vsyncpa [#allocation3], 0
    %15 = vsyncpa [#allocation6], 0
    %16 = vsyncpa [#allocation9], 0
    %s17 = scalar_lea.sflag [#allocation9], 1
    %18 = vsyncpa %s17, 0
    %19 = vsyncpa [#allocation4], 0
    %s20 = scalar_lea.sflag [#allocation4], 1
    %21 = vsyncpa %s20, 0
    loop: start=0, step=1, limit=4
    $region2: #{tpu_custom_call.1} parent=1 // loop_pre_header
      _
    $region3: #{tpu_custom_call.1} parent=1 // loop_header
      %s23 = sphi 0, %s27
      %p24 = scmp.ge.s32.totalorder %s23, 4
      %s31 = sphi 0, %s31
      %s33 = sphi 0, %s31
      %s34 = sphi 0, %s33
      %s48 = sphi 0, %s34
      %s52 = sphi 0, %s52
      %s54 = sphi 0, %s52
      %s55 = sphi 0, %s54
      %s69 = sphi 0, %s55
      %s73 = sphi 0, %s73
      %s75 = sphi 0, %s73
      %s76 = sphi 0, %s75
      %s90 = sphi 0, %s76
      %s94 = sphi 0, %s94
      %s96 = sphi 0, %s94
      %s97 = sphi 0, %s96
      %s111 = sphi 0, %s97
      %s117 = sphi 0, %s119
      %s120 = sphi 0, %s117
      %s121 = sphi 0, %s120
      %s137 = sphi 0, %s121
      %s143 = sphi 0, %s145
      %s146 = sphi 0, %s143
      %s147 = sphi 0, %s146
      %s163 = sphi 0, %s147
      %s169 = sphi 0, %s171
      %s172 = sphi 0, %s169
      %s173 = sphi 0, %s172
      %s189 = sphi 0, %s173
      %s195 = sphi 0, %s197
      %s198 = sphi 0, %s195
      %s199 = sphi 0, %s198
      %s215 = sphi 0, %s199
      %s221 = sphi 0, %s223
      %s224 = sphi 0, %s221
      %s225 = sphi 0, %s224
      %s241 = sphi 0, %s225
      %s247 = sphi 0, %s249
      %s250 = sphi 0, %s247
      %s251 = sphi 0, %s250
      %s267 = sphi 0, %s251
    $region4: #{tpu_custom_call.1} parent=1 // loop_header_branch
      %26 = sbr.rel (%p24) target = $region8
    $region5: #{tpu_custom_call.1} parent=1 // loop_body
      %s28 = ssub.s32 %s23, 1
      %s29 = ssub.s32 %s23, 2
      %s30 = sadd.s32 %s23, 1
      %s32 = sadd.s32 %s31, 1
      %p35 = scmp.eq.s32.totalorder %s23, 1
      %p36 = scmp.ne.s32.totalorder %s31, %s33
      %p37 = scmp.eq.s32.totalorder %s23, 0
      %p38 = por %p36, %p37
      %p39 = scmp.ne.s32.totalorder %s31, %s33
      %p40 = scmp.eq.s32.totalorder %s28, 1
      %p41 = por %p39, %p40
      %p42 = scmp.ne.s32.totalorder %s33, %s34
      %p43 = scmp.eq.s32.totalorder %s28, 0
      %p44 = por %p42, %p43
      %p45 = scmp.ne.s32.totalorder %s33, %s34
      %p46 = scmp.eq.s32.totalorder %s29, 1
      %p47 = por %p45, %p46
      %p49 = scmp.ne.s32.totalorder %s34, %s48
      %p50 = scmp.eq.s32.totalorder %s29, 0
      %p51 = por %p49, %p50
      %s53 = sadd.s32 %s52, 1
      %p56 = scmp.eq.s32.totalorder %s23, 1
      %p57 = scmp.ne.s32.totalorder %s52, %s54
      %p58 = scmp.eq.s32.totalorder %s23, 0
      %p59 = por %p57, %p58
      %p60 = scmp.ne.s32.totalorder %s52, %s54
      %p61 = scmp.eq.s32.totalorder %s28, 1
      %p62 = por %p60, %p61
      %p63 = scmp.ne.s32.totalorder %s54, %s55
      %p64 = scmp.eq.s32.totalorder %s28, 0
      %p65 = por %p63, %p64
      %p66 = scmp.ne.s32.totalorder %s54, %s55
      %p67 = scmp.eq.s32.totalorder %s29, 1
      %p68 = por %p66, %p67
      %p70 = scmp.ne.s32.totalorder %s55, %s69
      %p71 = scmp.eq.s32.totalorder %s29, 0
      %p72 = por %p70, %p71
      %s74 = sadd.s32 %s73, 1
      %p77 = scmp.eq.s32.totalorder %s23, 1
      %p78 = scmp.ne.s32.totalorder %s73, %s75
      %p79 = scmp.eq.s32.totalorder %s23, 0
      %p80 = por %p78, %p79
      %p81 = scmp.ne.s32.totalorder %s73, %s75
      %p82 = scmp.eq.s32.totalorder %s28, 1
      %p83 = por %p81, %p82
      %p84 = scmp.ne.s32.totalorder %s75, %s76
      %p85 = scmp.eq.s32.totalorder %s28, 0
      %p86 = por %p84, %p85
      %p87 = scmp.ne.s32.totalorder %s75, %s76
      %p88 = scmp.eq.s32.totalorder %s29, 1
      %p89 = por %p87, %p88
      %p91 = scmp.ne.s32.totalorder %s76, %s90
      %p92 = scmp.eq.s32.totalorder %s29, 0
      %p93 = por %p91, %p92
      %s95 = sadd.s32 %s94, 1
      %p98 = scmp.eq.s32.totalorder %s23, 1
      %p99 = scmp.ne.s32.totalorder %s94, %s96
      %p100 = scmp.eq.s32.totalorder %s23, 0
      %p101 = por %p99, %p100
      %p102 = scmp.ne.s32.totalorder %s94, %s96
      %p103 = scmp.eq.s32.totalorder %s28, 1
      %p104 = por %p102, %p103
      %p105 = scmp.ne.s32.totalorder %s96, %s97
      %p106 = scmp.eq.s32.totalorder %s28, 0
      %p107 = por %p105, %p106
      %p108 = scmp.ne.s32.totalorder %s96, %s97
      %p109 = scmp.eq.s32.totalorder %s29, 1
      %p110 = por %p108, %p109
      %p112 = scmp.ne.s32.totalorder %s97, %s111
      %p113 = scmp.eq.s32.totalorder %s29, 0
      %p114 = por %p112, %p113
      %s115 = ssub.s32 %s23, %s30
      %p116 = scmp.eq.s32.totalorder %s115, 0
      %s118 = sadd.s32 %s117, 1
      %s119 = scalar_select %p116, %s117, %s118
      %p122 = pneg %p116
      %p123 = scmp.eq.s32.totalorder %s23, 1
      %p124 = por %p122, %p123
      %p125 = scmp.ne.s32.totalorder %s117, %s120
      %p126 = scmp.eq.s32.totalorder %s23, 0
      %p127 = por %p125, %p126
      %p128 = scmp.ne.s32.totalorder %s117, %s120
      %p129 = scmp.eq.s32.totalorder %s28, 1
      %p130 = por %p128, %p129
      %p131 = scmp.ne.s32.totalorder %s120, %s121
      %p132 = scmp.eq.s32.totalorder %s28, 0
      %p133 = por %p131, %p132
      %p134 = scmp.ne.s32.totalorder %s120, %s121
      %p135 = scmp.eq.s32.totalorder %s29, 1
      %p136 = por %p134, %p135
      %p138 = scmp.ne.s32.totalorder %s121, %s137
      %p139 = scmp.eq.s32.totalorder %s29, 0
      %p140 = por %p138, %p139
      %s141 = ssub.s32 %s23, %s30
      %p142 = scmp.eq.s32.totalorder %s141, 0
      %s144 = sadd.s32 %s143, 1
      %s145 = scalar_select %p142, %s143, %s144
      %p148 = pneg %p142
      %p149 = scmp.eq.s32.totalorder %s23, 1
      %p150 = por %p148, %p149
      %p151 = scmp.ne.s32.totalorder %s143, %s146
      %p152 = scmp.eq.s32.totalorder %s23, 0
      %p153 = por %p151, %p152
      %p154 = scmp.ne.s32.totalorder %s143, %s146
      %p155 = scmp.eq.s32.totalorder %s28, 1
      %p156 = por %p154, %p155
      %p157 = scmp.ne.s32.totalorder %s146, %s147
      %p158 = scmp.eq.s32.totalorder %s28, 0
      %p159 = por %p157, %p158
      %p160 = scmp.ne.s32.totalorder %s146, %s147
      %p161 = scmp.eq.s32.totalorder %s29, 1
      %p162 = por %p160, %p161
      %p164 = scmp.ne.s32.totalorder %s147, %s163
      %p165 = scmp.eq.s32.totalorder %s29, 0
      %p166 = por %p164, %p165
      %s167 = ssub.s32 %s23, %s30
      %p168 = scmp.eq.s32.totalorder %s167, 0
      %s170 = sadd.s32 %s169, 1
      %s171 = scalar_select %p168, %s169, %s170
      %p174 = pneg %p168
      %p175 = scmp.eq.s32.totalorder %s23, 1
      %p176 = por %p174, %p175
      %p177 = scmp.ne.s32.totalorder %s169, %s172
      %p178 = scmp.eq.s32.totalorder %s23, 0
      %p179 = por %p177, %p178
      %p180 = scmp.ne.s32.totalorder %s169, %s172
      %p181 = scmp.eq.s32.totalorder %s28, 1
      %p182 = por %p180, %p181
      %p183 = scmp.ne.s32.totalorder %s172, %s173
      %p184 = scmp.eq.s32.totalorder %s28, 0
      %p185 = por %p183, %p184
      %p186 = scmp.ne.s32.totalorder %s172, %s173
      %p187 = scmp.eq.s32.totalorder %s29, 1
      %p188 = por %p186, %p187
      %p190 = scmp.ne.s32.totalorder %s173, %s189
      %p191 = scmp.eq.s32.totalorder %s29, 0
      %p192 = por %p190, %p191
      %s193 = ssub.s32 %s23, %s30
      %p194 = scmp.eq.s32.totalorder %s193, 0
      %s196 = sadd.s32 %s195, 1
      %s197 = scalar_select %p194, %s195, %s196
      %p200 = pneg %p194
      %p201 = scmp.eq.s32.totalorder %s23, 1
      %p202 = por %p200, %p201
      %p203 = scmp.ne.s32.totalorder %s195, %s198
      %p204 = scmp.eq.s32.totalorder %s23, 0
      %p205 = por %p203, %p204
      %p206 = scmp.ne.s32.totalorder %s195, %s198
      %p207 = scmp.eq.s32.totalorder %s28, 1
      %p208 = por %p206, %p207
      %p209 = scmp.ne.s32.totalorder %s198, %s199
      %p210 = scmp.eq.s32.totalorder %s28, 0
      %p211 = por %p209, %p210
      %p212 = scmp.ne.s32.totalorder %s198, %s199
      %p213 = scmp.eq.s32.totalorder %s29, 1
      %p214 = por %p212, %p213
      %p216 = scmp.ne.s32.totalorder %s199, %s215
      %p217 = scmp.eq.s32.totalorder %s29, 0
      %p218 = por %p216, %p217
      %s219 = ssub.s32 %s23, %s30
      %p220 = scmp.eq.s32.totalorder %s219, 0
      %s222 = sadd.s32 %s221, 1
      %s223 = scalar_select %p220, %s221, %s222
      %p226 = pneg %p220
      %p227 = scmp.eq.s32.totalorder %s23, 1
      %p228 = por %p226, %p227
      %p229 = scmp.ne.s32.totalorder %s221, %s224
      %p230 = scmp.eq.s32.totalorder %s23, 0
      %p231 = por %p229, %p230
      %p232 = scmp.ne.s32.totalorder %s221, %s224
      %p233 = scmp.eq.s32.totalorder %s28, 1
      %p234 = por %p232, %p233
      %p235 = scmp.ne.s32.totalorder %s224, %s225
      %p236 = scmp.eq.s32.totalorder %s28, 0
      %p237 = por %p235, %p236
      %p238 = scmp.ne.s32.totalorder %s224, %s225
      %p239 = scmp.eq.s32.totalorder %s29, 1
      %p240 = por %p238, %p239
      %p242 = scmp.ne.s32.totalorder %s225, %s241
      %p243 = scmp.eq.s32.totalorder %s29, 0
      %p244 = por %p242, %p243
      %s245 = ssub.s32 %s23, %s30
      %p246 = scmp.eq.s32.totalorder %s245, 0
      %s248 = sadd.s32 %s247, 1
      %s249 = scalar_select %p246, %s247, %s248
      %p252 = pneg %p246
      %p253 = scmp.eq.s32.totalorder %s23, 1
      %p254 = por %p252, %p253
      %p255 = scmp.ne.s32.totalorder %s247, %s250
      %p256 = scmp.eq.s32.totalorder %s23, 0
      %p257 = por %p255, %p256
      %p258 = scmp.ne.s32.totalorder %s247, %s250
      %p259 = scmp.eq.s32.totalorder %s28, 1
      %p260 = por %p258, %p259
      %p261 = scmp.ne.s32.totalorder %s250, %s251
      %p262 = scmp.eq.s32.totalorder %s28, 0
      %p263 = por %p261, %p262
      %p264 = scmp.ne.s32.totalorder %s250, %s251
      %p265 = scmp.eq.s32.totalorder %s29, 1
      %p266 = por %p264, %p265
      %p268 = scmp.ne.s32.totalorder %s251, %s267
      %p269 = scmp.eq.s32.totalorder %s29, 0
      %p270 = por %p268, %p269
      %p271 = scmp.le.s32.totalorder 1, %s23
      %p272 = scmp.lt.s32.totalorder %s23, 3
      %p273 = pnand %p271, %p272
      %p274 = pneg %p273
      // Predicated region
      $region9: #{tpu_custom_call.1} parent=5 // pred_check
        _
      $region10: #{tpu_custom_call.1} parent=5 // pred_check_branch
        %276 = sbr.rel (%p273) target = $region12
      $region11: #{tpu_custom_call.1} parent=5 // pred_region
        %s277 = ssub.s32 %s23, 1
        // Predicated region
        $region13: #{tpu_custom_call.1} parent=11 // pred_check
          %p278 = pneg %p44
        $region14: #{tpu_custom_call.1} parent=11 // pred_check_branch
          %280 = sbr.rel (%p278) target = $region16
        $region15: #{tpu_custom_call.1} parent=11 // pred_region
          _
        $region16: #{tpu_custom_call.1} parent=11 // pred_fallthru
          _
        // Predicated region
        $region17: #{tpu_custom_call.1} parent=11 // pred_check
          %p281 = pneg %p65
        $region18: #{tpu_custom_call.1} parent=11 // pred_check_branch
          %283 = sbr.rel (%p281) target = $region20
        $region19: #{tpu_custom_call.1} parent=11 // pred_region
          %285 = vsyncadd [#allocation3], 0
          %s287 = sshll.u32 %s1, 4
          %s288 = int_to_ptr.hbm [resolvable:$true] %s287
          %s289 = sshll.u32 [#allocation2], 4
          %s290 = int_to_ptr.vmem [resolvable:$true] %s289
          %292 = dma.hbm_to_vmem [thread:$0]  %s288, 32, %s290, [#allocation3]
        $region20: #{tpu_custom_call.1} parent=11 // pred_fallthru
          _
        // Predicated region
        $region21: #{tpu_custom_call.1} parent=11 // pred_check
          %p293 = pneg %p86
        $region22: #{tpu_custom_call.1} parent=11 // pred_check_branch
          %295 = sbr.rel (%p293) target = $region24
        $region23: #{tpu_custom_call.1} parent=11 // pred_region
          %297 = vsyncadd [#allocation6], 0
          %s299 = sshll.u32 %s2, 4
          %s300 = int_to_ptr.hbm [resolvable:$true] %s299
          %s301 = sshll.u32 [#allocation5], 4
          %s302 = int_to_ptr.vmem [resolvable:$true] %s301
          %304 = dma.hbm_to_vmem [thread:$0]  %s300, 32, %s302, [#allocation6]
        $region24: #{tpu_custom_call.1} parent=11 // pred_fallthru
          _
        // Predicated region
        $region25: #{tpu_custom_call.1} parent=11 // pred_check
          %p305 = pneg %p107
        $region26: #{tpu_custom_call.1} parent=11 // pred_check_branch
          %307 = sbr.rel (%p305) target = $region28
        $region27: #{tpu_custom_call.1} parent=11 // pred_region
          %309 = vsyncadd [#allocation6], 0
          %s311 = sshll.u32 %s3, 4
          %s312 = int_to_ptr.hbm [resolvable:$true] %s311
          %s313 = sshll.u32 [#allocation7], 4
          %s314 = int_to_ptr.vmem [resolvable:$true] %s313
          %316 = dma.hbm_to_vmem [thread:$0]  %s312, 32, %s314, [#allocation6]
        $region28: #{tpu_custom_call.1} parent=11 // pred_fallthru
          _
      $region12: #{tpu_custom_call.1} parent=5 // pred_fallthru
        _
      %p317 = scmp.lt.s32.totalorder %s23, 2
      // Predicated region
      $region29: #{tpu_custom_call.1} parent=5 // pred_check
        %p318 = pneg %p317
      $region30: #{tpu_custom_call.1} parent=5 // pred_check_branch
        %320 = sbr.rel (%p318) target = $region32
      $region31: #{tpu_custom_call.1} parent=5 // pred_region
        // Predicated region
        $region33: #{tpu_custom_call.1} parent=31 // pred_check
          %p321 = pneg %p127
        $region34: #{tpu_custom_call.1} parent=31 // pred_check_branch
          %323 = sbr.rel (%p321) target = $region36
        $region35: #{tpu_custom_call.1} parent=31 // pred_region
          %p324 = scmp.lt.s32.totalorder %s23, 1
          %s325 = scalar_select %p324, %s23, 1
          %s326 = smul.addr %s325, 2
          %s327 = scalar_lea.vmem %s4, %s326
        $region36: #{tpu_custom_call.1} parent=31 // pred_fallthru
          _
        // Predicated region
        $region37: #{tpu_custom_call.1} parent=31 // pred_check
          %p328 = pneg %p153
        $region38: #{tpu_custom_call.1} parent=31 // pred_check_branch
          %330 = sbr.rel (%p328) target = $region40
        $region39: #{tpu_custom_call.1} parent=31 // pred_region
          %p331 = scmp.lt.s32.totalorder %s23, 1
          %s332 = scalar_select %p331, %s23, 1
          %s333 = smul.addr %s332, 2
          %s334 = scalar_lea.vmem %s5, %s333
        $region40: #{tpu_custom_call.1} parent=31 // pred_fallthru
          _
        // Predicated region
        $region41: #{tpu_custom_call.1} parent=31 // pred_check
          %p335 = pneg %p179
        $region42: #{tpu_custom_call.1} parent=31 // pred_check_branch
          %337 = sbr.rel (%p335) target = $region44
        $region43: #{tpu_custom_call.1} parent=31 // pred_region
          %s338 = sand.u32 %s23, 1
          %s339 = scalar_lea.sflag [#allocation9], %s338
          %s340 = sand.u32 %s169, 1
          %s341 = smul.addr %s340, 2
          %s342 = scalar_lea.vmem [#allocation8], %s341
          %344 = vsyncadd %s339, 0
          %s345 = smul.addr %s23, 2
          %s346 = scalar_lea.hbm %s6, %s345
          %s348 = sshll.u32 %s346, 4
          %s349 = int_to_ptr.hbm [resolvable:$true] %s348
          %s350 = sshll.u32 %s342, 4
          %s351 = int_to_ptr.vmem [resolvable:$true] %s350
          %353 = dma.hbm_to_vmem [thread:$0]  %s349, 32, %s351, %s339
        $region44: #{tpu_custom_call.1} parent=31 // pred_fallthru
          _
        // Predicated region
        $region45: #{tpu_custom_call.1} parent=31 // pred_check
          %p354 = pneg %p205
        $region46: #{tpu_custom_call.1} parent=31 // pred_check_branch
          %356 = sbr.rel (%p354) target = $region48
        $region47: #{tpu_custom_call.1} parent=31 // pred_region
          %s357 = sand.u32 %s23, 1
          %s358 = scalar_lea.sflag [#allocation9], %s357
          %s359 = sand.u32 %s195, 1
          %s360 = scalar_lea.vmem [#allocation10], %s359
          %362 = vsyncadd %s358, 0
          %s363 = scalar_lea.hbm %s7, %s23
          %s365 = sshll.u32 %s363, 4
          %s366 = int_to_ptr.hbm [resolvable:$true] %s365
          %s367 = sshll.u32 %s360, 4
          %s368 = int_to_ptr.vmem [resolvable:$true] %s367
          %370 = dma.hbm_to_vmem [thread:$0]  %s366, 16, %s368, %s358
        $region48: #{tpu_custom_call.1} parent=31 // pred_fallthru
          _
        // Predicated region
        $region49: #{tpu_custom_call.1} parent=31 // pred_check
          %p371 = pneg %p231
        $region50: #{tpu_custom_call.1} parent=31 // pred_check_branch
          %373 = sbr.rel (%p371) target = $region52
        $region51: #{tpu_custom_call.1} parent=31 // pred_region
          %p374 = scmp.lt.s32.totalorder %s23, 1
          %s375 = scalar_select %p374, %s23, 1
          %s376 = smul.addr %s375, 2
          %s377 = scalar_lea.vmem %s8, %s376
        $region52: #{tpu_custom_call.1} parent=31 // pred_fallthru
          _
      $region32: #{tpu_custom_call.1} parent=5 // pred_fallthru
        _
      %p378 = scmp.le.s32.totalorder 1, %s23
      %p379 = scmp.lt.s32.totalorder %s23, 3
      %p380 = pnand %p378, %p379
      %p381 = pneg %p380
      // Predicated region
      $region53: #{tpu_custom_call.1} parent=5 // pred_check
        _
      $region54: #{tpu_custom_call.1} parent=5 // pred_check_branch
        %383 = sbr.rel (%p380) target = $region56
      $region55: #{tpu_custom_call.1} parent=5 // pred_region
        %s384 = ssub.s32 %s23, 1
        // Predicated region
        $region57: #{tpu_custom_call.1} parent=55 // pred_check
          %p385 = pneg %p65
        $region58: #{tpu_custom_call.1} parent=55 // pred_check_branch
          %387 = sbr.rel (%p385) target = $region60
        $region59: #{tpu_custom_call.1} parent=55 // pred_region
          %389 = dma.done [#allocation3], 32
        $region60: #{tpu_custom_call.1} parent=55 // pred_fallthru
          _
        // Predicated region
        $region61: #{tpu_custom_call.1} parent=55 // pred_check
          %p390 = pneg %p86
        $region62: #{tpu_custom_call.1} parent=55 // pred_check_branch
          %392 = sbr.rel (%p390) target = $region64
        $region63: #{tpu_custom_call.1} parent=55 // pred_region
          %394 = dma.done [#allocation6], 32
        $region64: #{tpu_custom_call.1} parent=55 // pred_fallthru
          _
        // Predicated region
        $region65: #{tpu_custom_call.1} parent=55 // pred_check
          %p395 = pneg %p107
        $region66: #{tpu_custom_call.1} parent=55 // pred_check_branch
          %397 = sbr.rel (%p395) target = $region68
        $region67: #{tpu_custom_call.1} parent=55 // pred_region
          %399 = dma.done [#allocation6], 32
        $region68: #{tpu_custom_call.1} parent=55 // pred_fallthru
          _
        %s400 = sand.u32 %s28, 1
        %s401 = scalar_lea.sflag [#allocation9], %s400
        %s402 = sand.u32 %s172, 1
        %s403 = smul.addr %s402, 2
        %s404 = scalar_lea.vmem [#allocation8], %s403
        // Predicated region
        $region69: #{tpu_custom_call.1} parent=55 // pred_check
          %p405 = pneg %p185
        $region70: #{tpu_custom_call.1} parent=55 // pred_check_branch
          %407 = sbr.rel (%p405) target = $region72
        $region71: #{tpu_custom_call.1} parent=55 // pred_region
          %409 = dma.done %s401, 32
        $region72: #{tpu_custom_call.1} parent=55 // pred_fallthru
          _
        %s410 = sand.u32 %s28, 1
        %s411 = scalar_lea.sflag [#allocation9], %s410
        %s412 = sand.u32 %s198, 1
        %s413 = scalar_lea.vmem [#allocation10], %s412
        // Predicated region
        $region73: #{tpu_custom_call.1} parent=55 // pred_check
          %p414 = pneg %p211
        $region74: #{tpu_custom_call.1} parent=55 // pred_check_branch
          %416 = sbr.rel (%p414) target = $region76
        $region75: #{tpu_custom_call.1} parent=55 // pred_region
          %418 = dma.done %s411, 16
        $region76: #{tpu_custom_call.1} parent=55 // pred_fallthru
          _
        %p419 = pneg %p44
        %p420 = pneg %p41
        %p421 = pneg %p65
        %p422 = pneg %p62
        %p423 = pneg %p86
        %p424 = pneg %p83
        %p425 = pneg %p107
        %p426 = pneg %p104
        %p427 = scmp.lt.s32.totalorder %s28, 1
        %s428 = scalar_select %p427, %s28, 1
        %s429 = smul.addr %s428, 2
        %s430 = scalar_lea.vmem %s4, %s429
        %p431 = pneg %p133
        %p432 = pneg %p130
        %p433 = scmp.lt.s32.totalorder %s28, 1
        %s434 = scalar_select %p433, %s28, 1
        %s435 = smul.addr %s434, 2
        %s436 = scalar_lea.vmem %s5, %s435
        %p437 = pneg %p159
        %p438 = pneg %p156
        %s439 = sand.u32 %s28, 1
        %s440 = scalar_lea.sflag [#allocation9], %s439
        %s441 = sand.u32 %s172, 1
        %s442 = smul.addr %s441, 2
        %s443 = scalar_lea.vmem [#allocation8], %s442
        %p444 = pneg %p185
        %p445 = pneg %p182
        %s446 = sand.u32 %s28, 1
        %s447 = scalar_lea.sflag [#allocation9], %s446
        %s448 = sand.u32 %s198, 1
        %s449 = scalar_lea.vmem [#allocation10], %s448
        %p450 = pneg %p211
        %p451 = pneg %p208
        %p452 = scmp.lt.s32.totalorder %s28, 1
        %s453 = scalar_select %p452, %s28, 1
        %s454 = smul.addr %s453, 2
        %s455 = scalar_lea.vmem %s8, %s454
        %p456 = pneg %p237
        %p457 = pneg %p234
        %p458 = pneg %p263
        %p459 = pneg %p260
        %s460 = sand.u32 %s250, 1
        %s461 = scalar_lea.sflag [#allocation4], %s460
        %s462 = sand.u32 %s250, 1
        %s463 = smul.addr %s462, 4
        %s464 = scalar_lea.vmem [#allocation11], %s463
        %p465 = scmp.lt.s32.totalorder %s28, 1
        %s466 = scalar_select %p465, %s28, 1
        %s467 = smul.addr %s466, 2
        %s468 = scalar_lea.vmem %s4, %s467
        %p469 = scmp.lt.s32.totalorder %s28, 1
        %s470 = scalar_select %p469, %s28, 1
        %s471 = smul.addr %s470, 2
        %s472 = scalar_lea.vmem %s5, %s471
        %p473 = scmp.lt.s32.totalorder %s28, 1
        %s474 = scalar_select %p473, %s28, 1
        %s475 = smul.addr %s474, 2
        %s476 = scalar_lea.vmem %s8, %s475
        %v478 = vld [vmem:[#allocation2] sm:$0x3]
        %v479 = vld [vmem:[%s468] sm:$0x3]
        %v480 = vld [vmem:[#allocation5] sm:$0x3]
        %v481 = vld [vmem:[%s472] sm:$0x3]
        %vm482 = vcmask 31744
        %v484 = vsel %vm482, %v480, 0
        %vm486 = vcmask 1041408
        %v488 = vsel %vm486, %v481, 0
        %490 = vmatpush.bf16.msra.mxu0 0
        %491 = vmatpush.bf16.msra.mxu0 0
        %492 = vmatpush.bf16.msra.mxu0 0
        %493 = vmatpush.bf16.msra.mxu0 0
        %494 = vmatpush.bf16.msra.mxu0 0
        %495 = vmatpush.bf16.msra.mxu0 0
        %496 = vmatpush.bf16.msra.mxu0 0
        %497 = vmatpush.bf16.msra.mxu0 %v488
        %498 = vmatmul.bf16.gmra.mxu0 %v484
        %v499 = vpop.f32.mrf.mxu0
        %v500 = vadd.f32 0.0, %v499
        %v501 = vpop.f32.mrf.mxu0
        %502 = vdwg.mxu0
        %v504 = vsel %vm482, %v478, 0
        %v507 = vsel %vm486, %v479, 0
        %509 = vmatpush.bf16.msra.mxu0 0
        %510 = vmatpush.bf16.msra.mxu0 0
        %511 = vmatpush.bf16.msra.mxu0 0
        %512 = vmatpush.bf16.msra.mxu0 0
        %513 = vmatpush.bf16.msra.mxu0 0
        %514 = vmatpush.bf16.msra.mxu0 0
        %515 = vmatpush.bf16.msra.mxu0 0
        %516 = vmatpush.bf16.msra.mxu0 %v507
        %517 = vmatmul.bf16.gmra.mxu0 %v504
        %v518 = vpop.f32.mrf.mxu0
        %v519 = vadd.f32 %v500, %v518
        %v520 = vpop.f32.mrf.mxu0
        %521 = vdwg.mxu0
        %v522 = vld [vmem:[#allocation7] sm:$0x3]
        %v523 = vld [vmem:[%s404] sm:$0x3]
        %v525 = vsel %vm482, %v522, 0
        %v528 = vsel %vm486, %v523, 0
        %530 = vmatpush.bf16.msra.mxu0 0
        %531 = vmatpush.bf16.msra.mxu0 0
        %532 = vmatpush.bf16.msra.mxu0 0
        %533 = vmatpush.bf16.msra.mxu0 0
        %534 = vmatpush.bf16.msra.mxu0 0
        %535 = vmatpush.bf16.msra.mxu0 0
        %536 = vmatpush.bf16.msra.mxu0 0
        %537 = vmatpush.bf16.msra.mxu0 %v528
        %538 = vmatmul.bf16.gmra.mxu0 %v525
        %v539 = vpop.f32.mrf.mxu0
        %v540 = vadd.f32 0.0, %v539
        %v541 = vpop.f32.mrf.mxu0
        %542 = vdwg.mxu0
        %v543 = vadd.f32 %v519, %v540
        %v544 = vld [vmem:[%s0] sm:$0xf]
        %546 = vset.pattern.permute.xlu0 0
        %547 = vperm.xlu0 %546, %v544
        %v548 = vpop.permute.xlu0 %547
        %v550 = vadd.f32 %v543, %v548
        %v551 = vld [vmem:[%s413] sm:$0x1]
        %v552 = vunpack.c.l.bf16 %v551
        %v553 = vld [vmem:[%s476] sm:$0x3]
        %v554 = vunpack.c.l.bf16 %v553
        %v555 = vsub.f32 1.0, %v552
        %v556 = vperm.slane %v555, 0
        %v557 = vmul.f32 %v554, %v556
        %v558 = vperm.slane %v552, 0
        %v559 = vmul.f32 %v558, %v550
        %v560 = vadd.f32 %v557, %v559
        %561 = vst [vmem:[%s464] sm:$0xf] %v560
        %s562 = sand.u32 %s250, 1
        %s563 = scalar_lea.sflag [#allocation4], %s562
        %s564 = sand.u32 %s250, 1
        %s565 = smul.addr %s564, 4
        %s566 = scalar_lea.vmem [#allocation11], %s565
        // Predicated region
        $region77: #{tpu_custom_call.1} parent=55 // pred_check
          %p567 = pneg %p260
        $region78: #{tpu_custom_call.1} parent=55 // pred_check_branch
          %569 = sbr.rel (%p567) target = $region80
        $region79: #{tpu_custom_call.1} parent=55 // pred_region
          %571 = vsyncadd %s563, 0
          %s572 = smul.addr %s28, 4
          %s573 = scalar_lea.hbm %s9, %s572
          %s575 = sshll.u32 %s566, 4
          %s576 = int_to_ptr.vmem [resolvable:$true] %s575
          %s577 = sshll.u32 %s573, 4
          %s578 = int_to_ptr.hbm [resolvable:$true] %s577
          %580 = dma.vmem_to_hbm [thread:$0]  %s576, 64, %s578, %s563
        $region80: #{tpu_custom_call.1} parent=55 // pred_fallthru
          _
      $region56: #{tpu_custom_call.1} parent=5 // pred_fallthru
        _
      %p581 = scmp.le.s32.totalorder 2, %s23
      // Predicated region
      $region81: #{tpu_custom_call.1} parent=5 // pred_check
        %p582 = pneg %p581
      $region82: #{tpu_custom_call.1} parent=5 // pred_check_branch
        %584 = sbr.rel (%p582) target = $region84
      $region83: #{tpu_custom_call.1} parent=5 // pred_region
        %s585 = ssub.s32 %s23, 2
        // Predicated region
        $region85: #{tpu_custom_call.1} parent=83 // pred_check
          %p586 = pneg %p266
        $region86: #{tpu_custom_call.1} parent=83 // pred_check_branch
          %588 = sbr.rel (%p586) target = $region88
        $region87: #{tpu_custom_call.1} parent=83 // pred_region
          %s589 = sand.u32 %s251, 1
          %s590 = scalar_lea.sflag [#allocation4], %s589
          %s591 = sand.u32 %s251, 1
          %s592 = smul.addr %s591, 4
          %s593 = scalar_lea.vmem [#allocation11], %s592
          %595 = dma.done %s590, 64
        $region88: #{tpu_custom_call.1} parent=83 // pred_fallthru
          _
      $region84: #{tpu_custom_call.1} parent=5 // pred_fallthru
        _
    $region6: #{tpu_custom_call.1} parent=1 // loop_footer
      %s27 = sadd.s32 1, %s23
    $region7: #{tpu_custom_call.1} parent=1 // loop_footer_branch
      %22 = sbr.rel target = $region3
    $region8: #{tpu_custom_call.1} parent=1 // loop_exit
      _
    %596 = vsyncpa [#allocation3], 1
    %s597 = scalar_lea.sflag [#allocation3], 1
    %598 = vsyncpa %s597, 1
    %599 = vsyncpa [#allocation6], 1
    %600 = vsyncpa [#allocation9], 1
    %s601 = scalar_lea.sflag [#allocation9], 1
    %602 = vsyncpa %s601, 1
    %603 = vsyncpa [#allocation4], 1
    %s604 = scalar_lea.sflag [#allocation4], 1
    %605 = vsyncpa %s604, 1

</llo_original>
